<compile_context>
chip_gen: v7x
topology: tpu7x:2x2x1
jax: 0.10.0
libtpu: 0.0.40
codegen_flags: <defaults>
</compile_context>

<pallas_src>
import jax
import jax.numpy as jnp
from jax.experimental import pallas as pl
from jax.experimental.pallas import tpu as pltpu


def _fc2_packed_kernel(x_ref, w_ref, b_ref, o_ref):
    # x_ref: (tbp, H*p) VMEM    w_ref: (H*p, p) VMEM (block-diagonal, resident)
    # b_ref: (1,) SMEM scalar   o_ref: (tbp, p) VMEM
    acc = jnp.dot(x_ref[...], w_ref[...], preferred_element_type=jnp.float32)
    o_ref[...] = (acc + b_ref[0]).astype(o_ref.dtype)


def vector2pot_forward(vector, weight, bias, *, pack_max=32, rows_per_tile=64 * 1024):
    """potential = vector @ weight.T + bias   (nn.Linear(H, 1) semantics).

    vector: (B, H) float32
    weight: (1, H) float32   (PyTorch nn.Linear weight layout)
    bias:   (1,)   float32
    returns (B, 1) float32
    """
    B, H = vector.shape
    dtype = vector.dtype
    itemsize = jnp.dtype(dtype).itemsize

    # Packing factor: largest power of two <= pack_max that divides B, so the
    # (B, H) -> (B//p, H*p) reshape is a free contiguous view (no pad copy).
    p = pack_max
    while p > 1 and B % p:
        p //= 2
    bp = B // p
    width = H * p
    x = vector.reshape(bp, width)

    # Block-diagonal weight (H*p, p): column c carries W for row offset c within
    # a packed row, so  x_packed @ w_bd  gives p per-row dot products at once.
    w_row = weight.reshape(H).astype(dtype)
    w_bd = (jnp.eye(p, dtype=dtype)[:, None, :] * w_row[None, :, None]).reshape(width, p)
    b = bias.reshape(1).astype(jnp.float32)

    # Batch tiling (in packed rows).  Keep >=2 tiles whenever the problem is big
    # enough so v7x's two TensorCores can split the "parallel" grid axis.
    if bp < 16:
        tbp = bp                                   # one full block; no (8,128) rounding needed
    else:
        num_tiles = max(2, pl.cdiv(B, rows_per_tile))
        tbp = (pl.cdiv(bp, num_tiles) + 7) // 8 * 8
    grid = (pl.cdiv(bp, tbp),)                     # ragged last block handled by Pallas

    out = pl.pallas_call(
        _fc2_packed_kernel,
        out_shape=jax.ShapeDtypeStruct((bp, p), dtype),
        grid=grid,
        in_specs=[
            pl.BlockSpec((tbp, width), lambda i: (i, 0)),   # lane-dense batch tile
            pl.BlockSpec((width, p), lambda i: (0, 0)),     # block-diag weight, resident
            pl.BlockSpec(memory_space=pltpu.SMEM),          # bias scalar in SMEM
        ],
        out_specs=pl.BlockSpec((tbp, p), lambda i: (i, 0)),
        compiler_params=pltpu.CompilerParams(
            dimension_semantics=("parallel",),              # megacore / 2-TC split
            vmem_limit_bytes=32 << 20,                      # v7x-safe scoped limit
        ),
        cost_estimate=pl.CostEstimate(
            flops=2 * bp * width * p,                       # actual MXU work
            transcendentals=0,
            bytes_accessed=bp * width * itemsize + width * p * itemsize
                           + bp * p * itemsize + 4,
        ),
    )(x, w_bd, b)

    return out.reshape(B, 1)                                # free contiguous reshape


if __name__ == "__main__":
    # Shapes implied by the forward: vector last dim == last_layer_hidden.
    batch = 8
    gnn_layer_hidden = 16   # unused by forward (conv1/conv2/fc1/dropout are dead code)
    last_layer_hidden = 32

    key = jax.random.PRNGKey(0)
    k_w, k_b, k_x, k_x2 = jax.random.split(key, 4)

    # Deterministic parameter init mirroring nn.Linear(last_layer_hidden, 1):
    # uniform(-1/sqrt(H), 1/sqrt(H)) for both weight and bias.
    bound = 1.0 / jnp.sqrt(jnp.float32(last_layer_hidden))
    fc2_weight = jax.random.uniform(
        k_w, (1, last_layer_hidden), jnp.float32, -bound, bound)
    fc2_bias = jax.random.uniform(k_b, (1,), jnp.float32, -bound, bound)

    # Small demo shape.
    vector = jax.random.normal(k_x, (batch, last_layer_hidden), jnp.float32)
    potential = jax.block_until_ready(
        vector2pot_forward(vector, fc2_weight, fc2_bias))
    ref = vector @ fc2_weight.T + fc2_bias
    assert potential.shape == (batch, 1)
    assert jnp.allclose(potential, ref, atol=1e-5, rtol=1e-5)

    # Larger, non-multiple batch: exercises packing, multi-tile grid and the
    # ragged last block (no padding copies).
    big_batch = 8200
    vector_big = jax.random.normal(k_x2, (big_batch, last_layer_hidden), jnp.float32)
    potential_big = jax.block_until_ready(
        vector2pot_forward(vector_big, fc2_weight, fc2_bias))
    ref_big = vector_big @ fc2_weight.T + fc2_bias
    assert potential_big.shape == (big_batch, 1)
    assert jnp.allclose(potential_big, ref_big, atol=1e-5, rtol=1e-5)

    print("KERNEL_OK")
</pallas_src>

<mosaic_0001>
module attributes {stable_mosaic.version = 11 : i64} {
  func.func @_fc2_packed_kernel(%arg0: i32, %arg1: memref<1x256xf32, #tpu.memory_space<vmem>>, %arg2: memref<256x8xf32, #tpu.memory_space<vmem>>, %arg3: memref<1xf32, #tpu.memory_space<smem>>, %arg4: memref<1x8xf32, #tpu.memory_space<vmem>>) attributes {dimension_semantics = [#tpu.dimension_semantics<parallel>], iteration_bounds = array<i64: 1>, scalar_prefetch = 0 : i64, scratch_operands = 0 : i64, tpu.core_type = #tpu.core_type<tc>, window_params = [{transform_indices = @transform_0, window_bounds = array<i64: 1, 256>}, {pipeline_mode = #tpu.pipeline_mode<synchronous>, transform_indices = @transform_1, window_bounds = array<i64: 256, 8>}, {transform_indices = @transform_2, window_bounds = array<i64: 1>}, {transform_indices = @transform_3, window_bounds = array<i64: 1, 8>}]} {
    %c0 = arith.constant 0 : index
    %c0_0 = arith.constant 0 : index
    %0 = vector.load %arg1[%c0, %c0_0] : memref<1x256xf32, #tpu.memory_space<vmem>>, vector<1x256xf32>
    %c0_1 = arith.constant 0 : index
    %c0_2 = arith.constant 0 : index
    %1 = vector.load %arg2[%c0_1, %c0_2] : memref<256x8xf32, #tpu.memory_space<vmem>>, vector<256x8xf32>
    %cst = arith.constant dense<0.000000e+00> : vector<1x8xf32>
    %2 = tpu.matmul %0, %1, %cst {dimension_numbers = #tpu.dot_dimension_numbers<[1], [0], [0], [1], [0, 0, 1, 1], [], []>} : vector<1x256xf32>, vector<256x8xf32>, vector<1x8xf32> -> vector<1x8xf32>
    %c0_3 = arith.constant 0 : index
    %3 = memref.load %arg3[%c0_3] : memref<1xf32, #tpu.memory_space<smem>>
    %4 = vector.broadcast %3 : f32 to vector<1x8xf32>
    %5 = arith.addf %2, %4 : vector<1x8xf32>
    %c0_4 = arith.constant 0 : index
    %c0_5 = arith.constant 0 : index
    %6 = vector.load %arg4[%c0_4, %c0_5] : memref<1x8xf32, #tpu.memory_space<vmem>>, vector<1x8xf32>
    tpu.vector_store %arg4[%c0_4, %c0_5], %5 {strides = array<i32>} : memref<1x8xf32, #tpu.memory_space<vmem>>, vector<1x8xf32>,
    return
  }
  func.func @transform_0(%arg0: i32) -> (i32, i32) {
    %c0_i32 = arith.constant 0 : i32
    %c0_i32_0 = arith.constant 0 : i32
    return %arg0, %c0_i32 : i32, i32
  }
  func.func @transform_1(%arg0: i32) -> (i32, i32) {
    %c0_i32 = arith.constant 0 : i32
    %c0_i32_0 = arith.constant 0 : i32
    %c0_i32_1 = arith.constant 0 : i32
    return %c0_i32, %c0_i32_0 : i32, i32
  }
  func.func @transform_2(%arg0: i32) -> i32 {
    %c0_i32 = arith.constant 0 : i32
    %c0_i32_0 = arith.constant 0 : i32
    return %c0_i32 : i32
  }
  func.func @transform_3(%arg0: i32) -> (i32, i32) {
    %c0_i32 = arith.constant 0 : i32
    %c0_i32_0 = arith.constant 0 : i32
    return %arg0, %c0_i32 : i32, i32
  }
}

</mosaic_0001>

<llo_original>
// kernel: tpu_custom_call.1
$region0: #{tpu_custom_call.1}
  #allocation0 [shape = 'u32[]', space=smem, size = 0x4, offset = 0x4, fixed_abs, tag = 'smem constant byte address 0x4 - core index']
  #allocation1 [shape = 'u32[144,128]{1,0:T(1,128)}', space=vmem, size = 0x12000, scoped, tag = 'internal scratch']
  #allocation2 [shape = 'f32[1]{0:T(128)S(6)}', space=smem, size = 0x200, scoped, tag = 'scoped memory for tpu_custom_call.1']
  %s0 = inlined_call_operand.vmem [shape: f32[1,256], index: 0, kind: input, shape index: {}]
  %s1 = inlined_call_operand.vmem [shape: f32[256,8], index: 1, kind: input, shape index: {}]
  %s2 = inlined_call_operand.<no memory space> [shape: f32[1], index: 2, kind: input, shape index: {}]
  %s3 = inlined_call_operand.hbm [shape: f32[1,8], index: 3, kind: output, shape index: {}]
  %s4 = sld [smem:[#allocation0]]
  $region22: #{tpu_custom_call.1} parent=0
    _
  %s6 = ssub.s32 1, %s4
  %s7 = scalar_select 0, %s6, %s4
  %8 = sst [smem:[#allocation2]] %s2
  $region1: #{tpu_custom_call.1} parent=0
    #allocation3 [shape = 'u8[512]{0}', space=vmem, size = 0x400, scoped, tag = 'output window, operand 0, single buffered']
    #allocation4 [shape = 's32[1]{0}', space=sflag, size = 0x4, scoped, tag = 'scoped memory for tpu_custom_call.1']
    %9 = vsyncpa [#allocation4], 0
    // Predicated region
    $region2: #{tpu_custom_call.1} parent=1 // pred_check
      _
    $region3: #{tpu_custom_call.1} parent=1 // pred_check_branch
      %11 = sbr.rel (0) target = $region5
    $region4: #{tpu_custom_call.1} parent=1 // pred_region
      _
    $region5: #{tpu_custom_call.1} parent=1 // pred_fallthru
      _
    // Predicated region
    $region6: #{tpu_custom_call.1} parent=1 // pred_check
      _
    $region7: #{tpu_custom_call.1} parent=1 // pred_check_branch
      %13 = sbr.rel (0) target = $region9
    $region8: #{tpu_custom_call.1} parent=1 // pred_region
      _
    $region9: #{tpu_custom_call.1} parent=1 // pred_fallthru
      _
    // Predicated region
    $region10: #{tpu_custom_call.1} parent=1 // pred_check
      _
    $region11: #{tpu_custom_call.1} parent=1 // pred_check_branch
      %15 = sbr.rel (0) target = $region13
    $region12: #{tpu_custom_call.1} parent=1 // pred_region
      _
    $region13: #{tpu_custom_call.1} parent=1 // pred_fallthru
      _
    %v16 = vld [vmem:[%s0] sm:$0x3]
    %v17 = vld [vmem:[%s1] sm:$0xff]
    %v18 = vld [vmem:[%s1 + $0x8] sm:$0xff]
    %v19 = vld [vmem:[%s1 + $0x10] sm:$0xff]
    %v20 = vld [vmem:[%s1 + $0x18] sm:$0xff]
    %v21 = vld [vmem:[%s1 + $0x20] sm:$0xff]
    %v22 = vld [vmem:[%s1 + $0x28] sm:$0xff]
    %v23 = vld [vmem:[%s1 + $0x30] sm:$0xff]
    %v24 = vld [vmem:[%s1 + $0x38] sm:$0xff]
    %v25 = vld [vmem:[%s1 + $0x40] sm:$0xff]
    %v26 = vld [vmem:[%s1 + $0x48] sm:$0xff]
    %v27 = vld [vmem:[%s1 + $0x50] sm:$0xff]
    %v28 = vld [vmem:[%s1 + $0x58] sm:$0xff]
    %v29 = vld [vmem:[%s1 + $0x60] sm:$0xff]
    %v30 = vld [vmem:[%s1 + $0x68] sm:$0xff]
    %v31 = vld [vmem:[%s1 + $0x70] sm:$0xff]
    %v32 = vld [vmem:[%s1 + $0x78] sm:$0xff]
    %v33 = vld [vmem:[%s1 + $0x80] sm:$0xff]
    %v34 = vld [vmem:[%s1 + $0x88] sm:$0xff]
    %v35 = vld [vmem:[%s1 + $0x90] sm:$0xff]
    %v36 = vld [vmem:[%s1 + $0x98] sm:$0xff]
    %v37 = vld [vmem:[%s1 + $0xa0] sm:$0xff]
    %v38 = vld [vmem:[%s1 + $0xa8] sm:$0xff]
    %v39 = vld [vmem:[%s1 + $0xb0] sm:$0xff]
    %v40 = vld [vmem:[%s1 + $0xb8] sm:$0xff]
    %v41 = vld [vmem:[%s1 + $0xc0] sm:$0xff]
    %v42 = vld [vmem:[%s1 + $0xc8] sm:$0xff]
    %v43 = vld [vmem:[%s1 + $0xd0] sm:$0xff]
    %v44 = vld [vmem:[%s1 + $0xd8] sm:$0xff]
    %v45 = vld [vmem:[%s1 + $0xe0] sm:$0xff]
    %v46 = vld [vmem:[%s1 + $0xe8] sm:$0xff]
    %v47 = vld [vmem:[%s1 + $0xf0] sm:$0xff]
    %v48 = vld [vmem:[%s1 + $0xf8] sm:$0xff]
    %s49 = sld [smem:[#allocation2]]
    %v50 = vstv %s49
    %v52 = vlaneseq
    %v53 = vshrl.u32 %v52, 7
    %v54 = vsub.s32 0, %v53
    %v55 = vrot.slane %v16, %v54
    %v56 = vlaneseq
    %v57 = vshrl.u32 %v56, 7
    %v58 = vsub.s32 1, %v57
    %v59 = vrot.slane %v16, %v58
    %62 = vmatprep.subr.mxu0 0.0
    %63 = vmatpush1.msra.mxu0 %v17
    %64 = vmatprep.subr.mxu0 0.0
    %65 = vmatpush1.msra.mxu0 %v18
    %66 = vmatprep.subr.mxu0 0.0
    %67 = vmatpush1.msra.mxu0 %v19
    %68 = vmatprep.subr.mxu0 0.0
    %69 = vmatpush1.msra.mxu0 %v20
    %70 = vmatprep.subr.mxu0 0.0
    %71 = vmatpush1.msra.mxu0 %v21
    %72 = vmatprep.subr.mxu0 0.0
    %73 = vmatpush1.msra.mxu0 %v22
    %74 = vmatprep.subr.mxu0 0.0
    %75 = vmatpush1.msra.mxu0 %v23
    %76 = vmatprep.subr.mxu0 0.0
    %77 = vmatpush1.msra.mxu0 %v24
    %78 = vmatprep.subr.mxu0 0.0
    %79 = vmatpush1.msra.mxu0 %v25
    %80 = vmatprep.subr.mxu0 0.0
    %81 = vmatpush1.msra.mxu0 %v26
    %82 = vmatprep.subr.mxu0 0.0
    %83 = vmatpush1.msra.mxu0 %v27
    %84 = vmatprep.subr.mxu0 0.0
    %85 = vmatpush1.msra.mxu0 %v28
    %86 = vmatprep.subr.mxu0 0.0
    %87 = vmatpush1.msra.mxu0 %v29
    %88 = vmatprep.subr.mxu0 0.0
    %89 = vmatpush1.msra.mxu0 %v30
    %90 = vmatprep.subr.mxu0 0.0
    %91 = vmatpush1.msra.mxu0 %v31
    %92 = vmatprep.subr.mxu0 0.0
    %93 = vmatpush1.msra.mxu0 %v32
    %94 = vmatprep.subr.mxu0 0.0
    %95 = vmatpush1.msra.mxu0 %v33
    %96 = vmatprep.subr.mxu0 0.0
    %97 = vmatpush1.msra.mxu0 %v34
    %98 = vmatprep.subr.mxu0 0.0
    %99 = vmatpush1.msra.mxu0 %v35
    %100 = vmatprep.subr.mxu0 0.0
    %101 = vmatpush1.msra.mxu0 %v36
    %102 = vmatprep.subr.mxu0 0.0
    %103 = vmatpush1.msra.mxu0 %v37
    %104 = vmatprep.subr.mxu0 0.0
    %105 = vmatpush1.msra.mxu0 %v38
    %106 = vmatprep.subr.mxu0 0.0
    %107 = vmatpush1.msra.mxu0 %v39
    %108 = vmatprep.subr.mxu0 0.0
    %109 = vmatpush1.msra.mxu0 %v40
    %110 = vmatprep.subr.mxu0 0.0
    %111 = vmatpush1.msra.mxu0 %v41
    %112 = vmatprep.subr.mxu0 0.0
    %113 = vmatpush1.msra.mxu0 %v42
    %114 = vmatprep.subr.mxu0 0.0
    %115 = vmatpush1.msra.mxu0 %v43
    %116 = vmatprep.subr.mxu0 0.0
    %117 = vmatpush1.msra.mxu0 %v44
    %118 = vmatprep.subr.mxu0 0.0
    %119 = vmatpush1.msra.mxu0 %v45
    %120 = vmatprep.subr.mxu0 0.0
    %121 = vmatpush1.msra.mxu0 %v46
    %122 = vmatprep.subr.mxu0 0.0
    %123 = vmatpush1.msra.mxu0 %v47
    %124 = vmatprep.subr.mxu0 0.0
    %125 = vmatpush1.msra.mxu0 %v48
    %126 = vmatprep.mubr.f32.mxu0 %v59
    %127 = vmatmul.mubr.f32.gmra.mrb[0].mxu0 %v55
    %v128 = vpop.f32.mrb[0].mxu0
    %v129 = vadd.f32 %v50, %v128
    %v130 = vpop.f32.mrb[0].mxu0
    %131 = vdwg.mxu0
    %vm132 = vcmask 57344
    %133 = vst.msk [vmem:[#allocation3] sm:$0x1] %vm132, %v129
    // Predicated region
    $region14: #{tpu_custom_call.1} parent=1 // pred_check
      _
    $region15: #{tpu_custom_call.1} parent=1 // pred_check_branch
      %135 = sbr.rel (0) target = $region17
    $region16: #{tpu_custom_call.1} parent=1 // pred_region
      %s137 = ssub.s32 16, 16
      %138 = vsyncadd [#allocation4], %s137
      %s140 = sshll.u32 [#allocation3], 4
      %s141 = int_to_ptr.vmem [resolvable:$true] %s140
      %143 = dma.vmem_to_hbm [thread:$0]  %s141, 16, %s3, [#allocation4]
    $region17: #{tpu_custom_call.1} parent=1 // pred_fallthru
      _
    // Predicated region
    $region18: #{tpu_custom_call.1} parent=1 // pred_check
      _
    $region19: #{tpu_custom_call.1} parent=1 // pred_check_branch
      %145 = sbr.rel (0) target = $region21
    $region20: #{tpu_custom_call.1} parent=1 // pred_region
      %146 = dma.done [#allocation4], 16
    $region21: #{tpu_custom_call.1} parent=1 // pred_fallthru
      _
    %147 = vsyncpa [#allocation4], 1

</llo_original>
